<compile_context>
chip_gen: v7x
topology: tpu7x:2x2x1
jax: 0.10.0
libtpu: 0.0.40
codegen_flags: <defaults>
</compile_context>

<pallas_src>
import functools
import math

import jax
import jax.numpy as jnp
from jax.experimental import pallas as pl
from jax.experimental.pallas import tpu as pltpu


_VMEM_LIMIT_BYTES = 32 * 1024 * 1024   # safe scoped-VMEM budget on v5e/v6e/v7x


def _cdiv(a, b):
    return (a + b - 1) // b


# ----------------------------------------------------------------------------
# Pass 1: per-metapath column sums of tanh(h @ W^T + b), lane-dense layout.
#   h2     : (N, M*d)       row block (tn, M*d)
#   w_blk  : (M*d, M*d)   = kron(I_M, W^T), bf16   (resident)
#   b_tile : (1, M*d)     = tile(b, M), f32        (resident)
#   out    : (C, 1, M*d)    per-shard partial column sums (f32)
# Grid (C, KB): leading "parallel" axis shards row blocks across TensorCores
# (v7x); trailing "arbitrary" axis accumulates into the resident output block.
# Duplicated blocks (odd nb shard split) and ragged-tail rows are masked.
# ----------------------------------------------------------------------------
def _scores_kernel(h_ref, w_ref, b_ref, out_ref, *, n_rows, kb, tn, needs_mask):
    k = pl.program_id(1)

    @pl.when(k == 0)
    def _init():
        out_ref[...] = jnp.zeros_like(out_ref)

    # bf16 MXU operands (single MXU pass); f32 accumulate + tanh.
    x = h_ref[...].astype(jnp.bfloat16)                      # (tn, M*d)
    t = jnp.tanh(
        jnp.dot(x, w_ref[...], preferred_element_type=jnp.float32)
        + b_ref[...]
    )

    if not needs_mask:
        out_ref[...] += jnp.sum(t, axis=0, keepdims=True)[None, :, :]
    else:
        c = pl.program_id(0)
        start = (c * kb + k) * tn          # virtual (unclamped) row offset
        is_full = start + tn <= n_rows

        @pl.when(is_full)
        def _acc_full():
            out_ref[...] += jnp.sum(t, axis=0, keepdims=True)[None, :, :]

        @pl.when(jnp.logical_not(is_full))
        def _acc_masked():
            # Ragged tail block, or a duplicated block from the odd-nb dual-TC
            # split (start >= n_rows -> fully masked, contributes zero).
            row_ids = jax.lax.broadcasted_iota(jnp.int32, (tn, 1), 0)
            tm = jnp.where(row_ids < (n_rows - start), t, 0.0)
            out_ref[...] += jnp.sum(tm, axis=0, keepdims=True)[None, :, :]


# ----------------------------------------------------------------------------
# Pass 2: weighted combine as one lane-dense matmul.
#   h4    : (N/G, G*M*d)    row block (tn4, G*M*d)
#   big_r : (G*M*d, G*d)  = kron(I_G, kron(beta, I_d)), bf16  (resident)
#   z4    : (N/G, G*d)   ==  z.reshape(N/G, G*d)
# ----------------------------------------------------------------------------
def _combine_kernel(h_ref, r_ref, z_ref):
    z_ref[...] = jnp.dot(
        h_ref[...].astype(jnp.bfloat16),
        r_ref[...],
        preferred_element_type=jnp.float32,
    ).astype(z_ref.dtype)


@functools.partial(jax.jit, static_argnames=("block_rows", "combine_block_rows"))
def attention_forward(h, fc_w, fc_b, attn, *,
                      block_rows=8192, combine_block_rows=2048):
    """z = (softmax(tanh(h @ fc_w.T + fc_b).mean(0) @ attn.T) * h).sum(1)."""
    N, M, d = h.shape
    MD = M * d
    f32 = jnp.float32
    bf16 = jnp.bfloat16

    # ---- lane-dense parameter packing (tiny, done once per call) -----------
    w_blk = jnp.kron(jnp.eye(M, dtype=f32), fc_w.astype(f32).T).astype(bf16)
    b_tile = jnp.tile(fc_b.astype(f32).reshape(1, d), (1, M))       # (1, MD)
    h2 = h.reshape(N, MD)

    # ---- pass 1: column sums of tanh(fc(h)) ---------------------------------
    tn = block_rows if N > block_rows else N
    if tn != N:
        tn = max(8, (tn // 8) * 8)
    nb = _cdiv(N, tn)
    # Dual-TC split whenever there are >= 2 blocks (odd counts included);
    # any duplicated trailing block is clamped in the index_map and masked.
    n_shards = 2 if nb >= 2 else 1
    kb = _cdiv(nb, n_shards)
    has_dup = n_shards * kb > nb
    needs_mask = (N % tn != 0) or has_dup

    kernel1 = functools.partial(_scores_kernel, n_rows=N, kb=kb, tn=tn,
                                needs_mask=needs_mask)
    partials = pl.pallas_call(
        kernel1,
        out_shape=jax.ShapeDtypeStruct((n_shards, 1, MD), f32),
        grid_spec=pltpu.PrefetchScalarGridSpec(
            num_scalar_prefetch=0,
            grid=(n_shards, kb),
            in_specs=[
                pl.BlockSpec((tn, MD),
                             lambda c, k: (jnp.minimum(c * kb + k, nb - 1), 0)),
                pl.BlockSpec((MD, MD), lambda c, k: (0, 0)),
                pl.BlockSpec((1, MD), lambda c, k: (0, 0)),
            ],
            out_specs=pl.BlockSpec((1, 1, MD), lambda c, k: (c, 0, 0)),
        ),
        compiler_params=pltpu.CompilerParams(
            dimension_semantics=("parallel", "arbitrary"),
            vmem_limit_bytes=_VMEM_LIMIT_BYTES,
        ),
    )(h2, w_blk, b_tile)

    # ---- tiny per-metapath reduction + softmax, hoisted into plain JAX ------
    colsum = partials.reshape(n_shards, MD).sum(axis=0)              # (MD,)
    mean = (colsum / N).reshape(M, d)                                # (M, d)
    w = jnp.sum(mean * attn.astype(f32).reshape(1, d), axis=1)       # (M,)
    beta = jax.nn.softmax(w)                                         # (M,)
    # TODO(synk): training-mode attn_drop would mask/scale `attn` (identity here).

    # ---- pass 2: z = sum_m beta[m] * h[:, m, :] as one lane-dense matmul ----
    # Fold G = 128//d rows into one 128-lane output row when possible so the
    # store path is unmasked; otherwise fall back to G = 1 (still correct).
    G = 128 // d if (d <= 128 and 128 % d == 0 and N % (128 // d) == 0) else 1
    N4, GMD, Gd = N // G, G * MD, G * d
    h4 = h.reshape(N4, GMD)
    big_r = jnp.kron(
        jnp.eye(G, dtype=f32),
        jnp.kron(beta.reshape(M, 1), jnp.eye(d, dtype=f32)),
    ).astype(bf16)                                                   # (GMD, Gd)

    tn4 = combine_block_rows if N4 > combine_block_rows else N4
    if tn4 != N4:
        tn4 = max(8, (tn4 // 8) * 8)

    z4 = pl.pallas_call(
        _combine_kernel,
        out_shape=jax.ShapeDtypeStruct((N4, Gd), h.dtype),
        grid_spec=pltpu.PrefetchScalarGridSpec(
            num_scalar_prefetch=0,
            grid=(_cdiv(N4, tn4),),
            in_specs=[
                pl.BlockSpec((tn4, GMD), lambda i: (i, 0)),
                pl.BlockSpec((GMD, Gd), lambda i: (0, 0)),
            ],
            out_specs=pl.BlockSpec((tn4, Gd), lambda i: (i, 0)),
        ),
        compiler_params=pltpu.CompilerParams(
            dimension_semantics=("parallel",),
            vmem_limit_bytes=_VMEM_LIMIT_BYTES,
        ),
    )(h4, big_r)

    return z4.reshape(N, d)


# Pure-JAX reference (mirrors the PyTorch forward, eval-mode dropout).
def attention_reference(h, fc_w, fc_b, attn):
    hp = jnp.einsum("nmd,kd->nmk", h, fc_w,
                    precision=jax.lax.Precision.HIGHEST) + fc_b
    w = jnp.einsum("md,kd->mk", jnp.tanh(hp).mean(axis=0), attn,
                   precision=jax.lax.Precision.HIGHEST)              # (M, 1)
    beta = jax.nn.softmax(w, axis=0)                                 # (M, 1)
    z = (beta[None, :, :] * h).sum(axis=1)                           # (N, d)
    return z


if __name__ == "__main__":
    M, d = 4, 32
    key = jax.random.PRNGKey(0)
    kh1, kh2, kw, kbias, ka = jax.random.split(key, 5)

    # Deterministic parameter init (xavier_normal with gain sqrt(2), uniform bias).
    gain = math.sqrt(2.0)
    std_fc = gain * math.sqrt(2.0 / (d + d))
    std_attn = gain * math.sqrt(2.0 / (1 + d))
    fc_w = std_fc * jax.random.normal(kw, (d, d), jnp.float32)
    fc_b = (1.0 / math.sqrt(d)) * jax.random.uniform(
        kbias, (d,), jnp.float32, minval=-1.0, maxval=1.0)
    attn = std_attn * jax.random.normal(ka, (1, d), jnp.float32)

    # bf16 MXU operands => compare against the f32 reference at ~bf16 accuracy.
    TOL = dict(atol=3e-2, rtol=3e-2)

    # --- test 1: f32, production-style defaults (single block per pass) -----
    N = 256
    h = jax.random.normal(kh1, (N, M, d), jnp.float32)
    z = jax.block_until_ready(attention_forward(h, fc_w, fc_b, attn))
    z_ref = attention_reference(h, fc_w, fc_b, attn)
    assert z.shape == (N, d)
    assert jnp.allclose(z, z_ref, **TOL), (
        f"f32 mismatch, max abs err {jnp.max(jnp.abs(z - z_ref))}")

    # --- test 2: ragged N + odd block count (dual-TC shard split with a
    #             duplicated masked block, ragged-tail masking, G=1 fallback) -
    N2 = 250
    h_r = jax.random.normal(kh2, (N2, M, d), jnp.float32)
    z_r = jax.block_until_ready(
        attention_forward(h_r, fc_w, fc_b, attn,
                          block_rows=96, combine_block_rows=64))
    z_r_ref = attention_reference(h_r, fc_w, fc_b, attn)
    assert z_r.shape == (N2, d)
    assert jnp.allclose(z_r, z_r_ref, **TOL), (
        f"ragged-N mismatch, max abs err {jnp.max(jnp.abs(z_r - z_r_ref))}")

    # --- test 3: bf16-resident h (halves HBM traffic; no upcast converts) ----
    h_bf = h.astype(jnp.bfloat16)
    z_bf = jax.block_until_ready(
        attention_forward(h_bf, fc_w, fc_b, attn,
                          block_rows=64, combine_block_rows=32))
    z_bf_ref = attention_reference(h_bf.astype(jnp.float32), fc_w, fc_b, attn)
    assert jnp.allclose(z_bf.astype(jnp.float32), z_bf_ref, **TOL), (
        f"bf16 mismatch, max abs err "
        f"{jnp.max(jnp.abs(z_bf.astype(jnp.float32) - z_bf_ref))}")

    print("KERNEL_OK")
</pallas_src>

<mosaic_0001>
module attributes {stable_mosaic.version = 11 : i64} {
  func.func @_scores_kernel(%arg0: i32, %arg1: i32, %arg2: memref<256x128xf32, #tpu.memory_space<vmem>>, %arg3: memref<128x128xbf16, #tpu.memory_space<vmem>>, %arg4: memref<1x128xf32, #tpu.memory_space<vmem>>, %arg5: memref<1x1x128xf32, #tpu.memory_space<vmem>>) attributes {dimension_semantics = [#tpu.dimension_semantics<parallel>, #tpu.dimension_semantics<arbitrary>], iteration_bounds = array<i64: 1, 1>, scalar_prefetch = 0 : i64, scratch_operands = 0 : i64, tpu.core_type = #tpu.core_type<tc>, window_params = [{transform_indices = @transform_0, window_bounds = array<i64: 256, 128>}, {pipeline_mode = #tpu.pipeline_mode<synchronous>, transform_indices = @transform_1, window_bounds = array<i64: 128, 128>}, {pipeline_mode = #tpu.pipeline_mode<synchronous>, transform_indices = @transform_2, window_bounds = array<i64: 1, 128>}, {transform_indices = @transform_3, window_bounds = array<i64: 1, 1, 128>}]} {
    %c0_i32 = arith.constant 0 : i32
    %0 = arith.cmpi eq, %arg1, %c0_i32 : i32
    %1 = arith.extui %0 : i1 to i32
    %c0_i32_0 = arith.constant 0 : i32
    %2 = arith.cmpi ne, %1, %c0_i32_0 : i32
    scf.if %2 {
      %cst_13 = arith.constant 0.000000e+00 : f32
      %17 = vector.broadcast %cst_13 : f32 to vector<1x1x128xf32>
      %c0_14 = arith.constant 0 : index
      %c0_15 = arith.constant 0 : index
      %c0_16 = arith.constant 0 : index
      %18 = vector.load %arg5[%c0_14, %c0_15, %c0_16] : memref<1x1x128xf32, #tpu.memory_space<vmem>>, vector<1x1x128xf32>
      tpu.vector_store %arg5[%c0_14, %c0_15, %c0_16], %17 {strides = array<i32>} : memref<1x1x128xf32, #tpu.memory_space<vmem>>, vector<1x1x128xf32>,
    } else {
    }
    %c0 = arith.constant 0 : index
    %c0_1 = arith.constant 0 : index
    %3 = vector.load %arg2[%c0, %c0_1] : memref<256x128xf32, #tpu.memory_space<vmem>>, vector<256x128xf32>
    %4 = arith.truncf %3 : vector<256x128xf32> to vector<256x128xbf16>
    %c0_2 = arith.constant 0 : index
    %c0_3 = arith.constant 0 : index
    %5 = vector.load %arg3[%c0_2, %c0_3] : memref<128x128xbf16, #tpu.memory_space<vmem>>, vector<128x128xbf16>
    %cst = arith.constant dense<0.000000e+00> : vector<256x128xf32>
    %6 = tpu.matmul %4, %5, %cst {dimension_numbers = #tpu.dot_dimension_numbers<[1], [0], [0], [1], [0, 0, 1, 1], [], []>} : vector<256x128xbf16>, vector<128x128xbf16>, vector<256x128xf32> -> vector<256x128xf32>
    %c0_4 = arith.constant 0 : index
    %c0_5 = arith.constant 0 : index
    %7 = vector.load %arg4[%c0_4, %c0_5] : memref<1x128xf32, #tpu.memory_space<vmem>>, vector<1x128xf32>
    %8 = vector.broadcast %7 : vector<1x128xf32> to vector<256x128xf32>
    %9 = arith.addf %6, %8 : vector<256x128xf32>
    %10 = math.tanh %9 : vector<256x128xf32>
    %c0_6 = arith.constant 0 : index
    %c0_7 = arith.constant 0 : index
    %c0_8 = arith.constant 0 : index
    %11 = vector.load %arg5[%c0_6, %c0_7, %c0_8] : memref<1x1x128xf32, #tpu.memory_space<vmem>>, vector<1x1x128xf32>
    %cst_9 = arith.constant dense<0.000000e+00> : vector<128xf32>
    %12 = vector.multi_reduction <add>, %10, %cst_9 [0] : vector<256x128xf32> to vector<128xf32>
    %13 = vector.shape_cast %12 : vector<128xf32> to vector<1x128xf32>
    %14 = vector.shape_cast %13 : vector<1x128xf32> to vector<1x1x128xf32>
    %15 = arith.addf %11, %14 : vector<1x1x128xf32>
    %c0_10 = arith.constant 0 : index
    %c0_11 = arith.constant 0 : index
    %c0_12 = arith.constant 0 : index
    %16 = vector.load %arg5[%c0_10, %c0_11, %c0_12] : memref<1x1x128xf32, #tpu.memory_space<vmem>>, vector<1x1x128xf32>
    tpu.vector_store %arg5[%c0_10, %c0_11, %c0_12], %15 {strides = array<i32>} : memref<1x1x128xf32, #tpu.memory_space<vmem>>, vector<1x1x128xf32>,
    return
  }
  func.func @transform_0(%arg0: i32, %arg1: i32) -> (i32, i32) {
    %c1_i32 = arith.constant 1 : i32
    %0 = arith.muli %arg0, %c1_i32 : i32
    %1 = arith.addi %0, %arg1 : i32
    %c0_i32 = arith.constant 0 : i32
    %2 = arith.minsi %1, %c0_i32 : i32
    %c0_i32_0 = arith.constant 0 : i32
    %c0_i32_1 = arith.constant 0 : i32
    return %2, %c0_i32_0 : i32, i32
  }
  func.func @transform_1(%arg0: i32, %arg1: i32) -> (i32, i32) {
    %c0_i32 = arith.constant 0 : i32
    %c0_i32_0 = arith.constant 0 : i32
    %c0_i32_1 = arith.constant 0 : i32
    return %c0_i32, %c0_i32_0 : i32, i32
  }
  func.func @transform_2(%arg0: i32, %arg1: i32) -> (i32, i32) {
    %c0_i32 = arith.constant 0 : i32
    %c0_i32_0 = arith.constant 0 : i32
    %c0_i32_1 = arith.constant 0 : i32
    return %c0_i32, %c0_i32_0 : i32, i32
  }
  func.func @transform_3(%arg0: i32, %arg1: i32) -> (i32, i32, i32) {
    %c0_i32 = arith.constant 0 : i32
    %c0_i32_0 = arith.constant 0 : i32
    %c0_i32_1 = arith.constant 0 : i32
    return %arg0, %c0_i32, %c0_i32_0 : i32, i32, i32
  }
}

module attributes {stable_mosaic.version = 11 : i64} {
  func.func @_combine_kernel(%arg0: i32, %arg1: memref<64x512xf32, #tpu.memory_space<vmem>>, %arg2: memref<512x128xbf16, #tpu.memory_space<vmem>>, %arg3: memref<64x128xf32, #tpu.memory_space<vmem>>) attributes {dimension_semantics = [#tpu.dimension_semantics<parallel>], iteration_bounds = array<i64: 1>, scalar_prefetch = 0 : i64, scratch_operands = 0 : i64, tpu.core_type = #tpu.core_type<tc>, window_params = [{transform_indices = @transform_0, window_bounds = array<i64: 64, 512>}, {pipeline_mode = #tpu.pipeline_mode<synchronous>, transform_indices = @transform_1, window_bounds = array<i64: 512, 128>}, {transform_indices = @transform_2, window_bounds = array<i64: 64, 128>}]} {
    %c0 = arith.constant 0 : index
    %c0_0 = arith.constant 0 : index
    %0 = vector.load %arg1[%c0, %c0_0] : memref<64x512xf32, #tpu.memory_space<vmem>>, vector<64x512xf32>
    %1 = arith.truncf %0 : vector<64x512xf32> to vector<64x512xbf16>
    %c0_1 = arith.constant 0 : index
    %c0_2 = arith.constant 0 : index
    %2 = vector.load %arg2[%c0_1, %c0_2] : memref<512x128xbf16, #tpu.memory_space<vmem>>, vector<512x128xbf16>
    %cst = arith.constant dense<0.000000e+00> : vector<64x128xf32>
    %3 = tpu.matmul %1, %2, %cst {dimension_numbers = #tpu.dot_dimension_numbers<[1], [0], [0], [1], [0, 0, 1, 1], [], []>} : vector<64x512xbf16>, vector<512x128xbf16>, vector<64x128xf32> -> vector<64x128xf32>
    %c0_3 = arith.constant 0 : index
    %c0_4 = arith.constant 0 : index
    %4 = vector.load %arg3[%c0_3, %c0_4] : memref<64x128xf32, #tpu.memory_space<vmem>>, vector<64x128xf32>
    tpu.vector_store %arg3[%c0_3, %c0_4], %3 {strides = array<i32>} : memref<64x128xf32, #tpu.memory_space<vmem>>, vector<64x128xf32>,
    return
  }
  func.func @transform_0(%arg0: i32) -> (i32, i32) {
    %c0_i32 = arith.constant 0 : i32
    %c0_i32_0 = arith.constant 0 : i32
    return %arg0, %c0_i32 : i32, i32
  }
  func.func @transform_1(%arg0: i32) -> (i32, i32) {
    %c0_i32 = arith.constant 0 : i32
    %c0_i32_0 = arith.constant 0 : i32
    %c0_i32_1 = arith.constant 0 : i32
    return %c0_i32, %c0_i32_0 : i32, i32
  }
  func.func @transform_2(%arg0: i32) -> (i32, i32) {
    %c0_i32 = arith.constant 0 : i32
    %c0_i32_0 = arith.constant 0 : i32
    return %arg0, %c0_i32 : i32, i32
  }
}

</mosaic_0001>

<llo_original>
// kernel: attention_forward.2
$region0: #{attention_forward.2}
  #allocation0 [shape = 'u32[]', space=smem, size = 0x4, offset = 0x4, fixed_abs, tag = 'smem constant byte address 0x4 - core index']
  #allocation1 [shape = 'u32[144,128]{1,0:T(1,128)}', space=vmem, size = 0x12000, scoped, tag = 'internal scratch']
  %s0 = inlined_call_operand.vmem [shape: f32[256,128], index: 0, kind: input, shape index: {}]
  %s1 = inlined_call_operand.vmem [shape: bf16[128,128], index: 1, kind: input, shape index: {}]
  %s2 = inlined_call_operand.vmem [shape: f32[1,128], index: 2, kind: input, shape index: {}]
  %s3 = inlined_call_operand.vmem [shape: f32[1,1,128], index: 3, kind: output, shape index: {}]
  %s4 = sld [smem:[#allocation0]]
  $region26: #{attention_forward.2} parent=0
    _
  %s6 = ssub.s32 1, %s4
  %s7 = scalar_select 0, %s6, %s4
  // Predicated region
  $region2: #{attention_forward.2} parent=0 // pred_check
    _
  $region3: #{attention_forward.2} parent=0 // pred_check_branch
    %9 = sbr.rel (0) target = $region5
  $region4: #{attention_forward.2} parent=0 // pred_region
    %s10 = sadd.s32 0, 0
    %p11 = scmp.lt.s32.totalorder %s10, 0
    %s12 = scalar_select %p11, %s10, 0
    %s13 = smul.u32 32, %s12
    %p14 = scmp.lt.s32.totalorder %s13, 31
    %s15 = scalar_select %p14, %s13, 31
    %s16 = smul.addr %s15, 8
    %s17 = scalar_lea.vmem %s0, %s16
    %s18 = sadd.s32 0, 0
    %p19 = scmp.lt.s32.totalorder %s18, 0
    %s20 = scalar_select %p19, %s18, 0
    %s21 = smul.u32 32, %s20
  $region5: #{attention_forward.2} parent=0 // pred_fallthru
    _
  // Predicated region
  $region6: #{attention_forward.2} parent=0 // pred_check
    _
  $region7: #{attention_forward.2} parent=0 // pred_check_branch
    %23 = sbr.rel (0) target = $region9
  $region8: #{attention_forward.2} parent=0 // pred_region
    _
  $region9: #{attention_forward.2} parent=0 // pred_fallthru
    _
  // Predicated region
  $region10: #{attention_forward.2} parent=0 // pred_check
    _
  $region11: #{attention_forward.2} parent=0 // pred_check_branch
    %25 = sbr.rel (0) target = $region13
  $region12: #{attention_forward.2} parent=0 // pred_region
    _
  $region13: #{attention_forward.2} parent=0 // pred_fallthru
    _
  %s26 = sadd.s32 0, 0
  %p27 = scmp.lt.s32.totalorder %s26, 0
  %s28 = scalar_select %p27, %s26, 0
  %s29 = smul.u32 32, %s28
  %p30 = scmp.lt.s32.totalorder %s29, 31
  %s31 = scalar_select %p30, %s29, 31
  %s32 = smul.addr %s31, 8
  %s33 = scalar_lea.vmem %s0, %s32
  %s34 = sadd.s32 0, 0
  %p35 = scmp.lt.s32.totalorder %s34, 0
  %s36 = scalar_select %p35, %s34, 0
  %s37 = smul.u32 32, %s36
  %p38 = scmp.lt.s32.totalorder %s37, 31
  %s39 = scalar_select %p38, %s37, 31
  %s40 = smul.addr %s39, 8
  %s41 = scalar_lea.vmem %s0, %s40
  %s42 = sadd.s32 0, 0
  %p43 = scmp.lt.s32.totalorder %s42, 0
  %s44 = scalar_select %p43, %s42, 0
  %s45 = smul.u32 32, %s44
  %p47 = scmp.eq.s32.totalorder 0, 0
  // Predicated region
  $region14: #{attention_forward.2} parent=0 // pred_check
    %p48 = pneg %p47
  $region15: #{attention_forward.2} parent=0 // pred_check_branch
    %50 = sbr.rel (%p48) target = $region17
  $region16: #{attention_forward.2} parent=0 // pred_region
    %51 = vst [vmem:[%s3] sm:$0x1] 0.0
  $region17: #{attention_forward.2} parent=0 // pred_fallthru
    _
  %v52 = vld [vmem:[%s41] sm:$0xff]
  %v53 = vld [vmem:[%s41 + $0x8] sm:$0xff]
  %v54 = vld [vmem:[%s41 + $0x10] sm:$0xff]
  %v55 = vld [vmem:[%s41 + $0x18] sm:$0xff]
  %v56 = vld [vmem:[%s41 + $0x20] sm:$0xff]
  %v57 = vld [vmem:[%s41 + $0x28] sm:$0xff]
  %v58 = vld [vmem:[%s41 + $0x30] sm:$0xff]
  %v59 = vld [vmem:[%s41 + $0x38] sm:$0xff]
  %v60 = vld [vmem:[%s41 + $0x40] sm:$0xff]
  %v61 = vld [vmem:[%s41 + $0x48] sm:$0xff]
  %v62 = vld [vmem:[%s41 + $0x50] sm:$0xff]
  %v63 = vld [vmem:[%s41 + $0x58] sm:$0xff]
  %v64 = vld [vmem:[%s41 + $0x60] sm:$0xff]
  %v65 = vld [vmem:[%s41 + $0x68] sm:$0xff]
  %v66 = vld [vmem:[%s41 + $0x70] sm:$0xff]
  %v67 = vld [vmem:[%s41 + $0x78] sm:$0xff]
  %v68 = vld [vmem:[%s41 + $0x80] sm:$0xff]
  %v69 = vld [vmem:[%s41 + $0x88] sm:$0xff]
  %v70 = vld [vmem:[%s41 + $0x90] sm:$0xff]
  %v71 = vld [vmem:[%s41 + $0x98] sm:$0xff]
  %v72 = vld [vmem:[%s41 + $0xa0] sm:$0xff]
  %v73 = vld [vmem:[%s41 + $0xa8] sm:$0xff]
  %v74 = vld [vmem:[%s41 + $0xb0] sm:$0xff]
  %v75 = vld [vmem:[%s41 + $0xb8] sm:$0xff]
  %v76 = vld [vmem:[%s41 + $0xc0] sm:$0xff]
  %v77 = vld [vmem:[%s41 + $0xc8] sm:$0xff]
  %v78 = vld [vmem:[%s41 + $0xd0] sm:$0xff]
  %v79 = vld [vmem:[%s41 + $0xd8] sm:$0xff]
  %v80 = vld [vmem:[%s41 + $0xe0] sm:$0xff]
  %v81 = vld [vmem:[%s41 + $0xe8] sm:$0xff]
  %v82 = vld [vmem:[%s41 + $0xf0] sm:$0xff]
  %v83 = vld [vmem:[%s41 + $0xf8] sm:$0xff]
  %v84 = vpack.c.bf16 %v53, %v52
  %v85 = vpack.c.bf16 %v55, %v54
  %v86 = vpack.c.bf16 %v57, %v56
  %v87 = vpack.c.bf16 %v59, %v58
  %v88 = vpack.c.bf16 %v61, %v60
  %v89 = vpack.c.bf16 %v63, %v62
  %v90 = vpack.c.bf16 %v65, %v64
  %v91 = vpack.c.bf16 %v67, %v66
  %v92 = vpack.c.bf16 %v69, %v68
  %v93 = vpack.c.bf16 %v71, %v70
  %v94 = vpack.c.bf16 %v73, %v72
  %v95 = vpack.c.bf16 %v75, %v74
  %v96 = vpack.c.bf16 %v77, %v76
  %v97 = vpack.c.bf16 %v79, %v78
  %v98 = vpack.c.bf16 %v81, %v80
  %v99 = vpack.c.bf16 %v83, %v82
  %v100 = vld [vmem:[%s1] sm:$0xf]
  %v101 = vld [vmem:[%s1 + $0x4] sm:$0xf]
  %v102 = vld [vmem:[%s1 + $0x8] sm:$0xf]
  %v103 = vld [vmem:[%s1 + $0xc] sm:$0xf]
  %v104 = vld [vmem:[%s1 + $0x10] sm:$0xf]
  %v105 = vld [vmem:[%s1 + $0x14] sm:$0xf]
  %v106 = vld [vmem:[%s1 + $0x18] sm:$0xf]
  %v107 = vld [vmem:[%s1 + $0x1c] sm:$0xf]
  %v108 = vld [vmem:[%s1 + $0x20] sm:$0xf]
  %v109 = vld [vmem:[%s1 + $0x24] sm:$0xf]
  %v110 = vld [vmem:[%s1 + $0x28] sm:$0xf]
  %v111 = vld [vmem:[%s1 + $0x2c] sm:$0xf]
  %v112 = vld [vmem:[%s1 + $0x30] sm:$0xf]
  %v113 = vld [vmem:[%s1 + $0x34] sm:$0xf]
  %v114 = vld [vmem:[%s1 + $0x38] sm:$0xf]
  %v115 = vld [vmem:[%s1 + $0x3c] sm:$0xf]
  %v116 = vld [vmem:[%s2] sm:$0x1]
  %v118 = vlaneseq
  %v119 = vshrl.u32 %v118, 7
  %v120 = vsub.s32 0, %v119
  %v121 = vrot.slane %v116, %v120
  %v139 = vunpack.c.l.b16 %v100
  %v140 = vunpack.c.l.b16 %v101
  %v141 = vunpack.c.l.b16 %v102
  %v142 = vunpack.c.l.b16 %v103
  %v143 = vunpack.c.l.b16 %v104
  %v144 = vunpack.c.l.b16 %v105
  %v145 = vunpack.c.l.b16 %v106
  %v146 = vunpack.c.l.b16 %v107
  %v147 = vunpack.c.l.b16 %v108
  %v148 = vunpack.c.l.b16 %v109
  %v149 = vunpack.c.l.b16 %v110
  %v150 = vunpack.c.l.b16 %v111
  %v151 = vunpack.c.l.b16 %v112
  %v152 = vunpack.c.l.b16 %v113
  %v153 = vunpack.c.l.b16 %v114
  %v154 = vunpack.c.l.b16 %v115
  %v155 = vpack.c.b16 %v140, %v139
  %v156 = vpack.c.b16 %v142, %v141
  %v157 = vpack.c.b16 %v144, %v143
  %v158 = vpack.c.b16 %v146, %v145
  %v159 = vpack.c.b16 %v148, %v147
  %v160 = vpack.c.b16 %v150, %v149
  %v161 = vpack.c.b16 %v152, %v151
  %v162 = vpack.c.b16 %v154, %v153
  %171 = vmatprep.subr.bf16.mxu0 0
  %172 = vmatpush1.bf16.msra.mxu0 %v155
  %173 = vmatprep.subr.bf16.mxu0 0
  %174 = vmatpush1.bf16.msra.mxu0 %v156
  %175 = vmatprep.subr.bf16.mxu0 0
  %176 = vmatpush1.bf16.msra.mxu0 %v157
  %177 = vmatprep.subr.bf16.mxu0 0
  %178 = vmatpush1.bf16.msra.mxu0 %v158
  %179 = vmatprep.subr.bf16.mxu0 0
  %180 = vmatpush1.bf16.msra.mxu0 %v159
  %181 = vmatprep.subr.bf16.mxu0 0
  %182 = vmatpush1.bf16.msra.mxu0 %v160
  %183 = vmatprep.subr.bf16.mxu0 0
  %184 = vmatpush1.bf16.msra.mxu0 %v161
  %185 = vmatprep.subr.bf16.mxu0 0
  %186 = vmatpush1.bf16.msra.mxu0 %v162
  %187 = vmatprep.subr.bf16.mxu0 0
  %188 = vmatpush1.bf16.msra.mxu0 0
  %189 = vmatprep.subr.bf16.mxu0 0
  %190 = vmatpush1.bf16.msra.mxu0 0
  %191 = vmatprep.subr.bf16.mxu0 0
  %192 = vmatpush1.bf16.msra.mxu0 0
  %193 = vmatprep.subr.bf16.mxu0 0
  %194 = vmatpush1.bf16.msra.mxu0 0
  %195 = vmatprep.subr.bf16.mxu0 0
  %196 = vmatpush1.bf16.msra.mxu0 0
  %197 = vmatprep.subr.bf16.mxu0 0
  %198 = vmatpush1.bf16.msra.mxu0 0
  %199 = vmatprep.subr.bf16.mxu0 0
  %200 = vmatpush1.bf16.msra.mxu0 0
  %201 = vmatprep.subr.bf16.mxu0 0
  %202 = vmatpush1.bf16.msra.mxu0 0
  %203 = vmatprep.mubr.bf16.mxu0 0
  %204 = vmatmul.mubr.bf16.gmra.mrb[0].mxu0 %v84
  %v205 = vpop.f32.mrb[0].mxu0
  %v206 = vadd.f32 %v121, %v205
  %v207 = vpop.f32.mrb[0].mxu0
  %v208 = vpop.f32.mrb[0].mxu0
  %v209 = vadd.f32 %v121, %v208
  %v210 = vpop.f32.mrb[0].mxu0
  %211 = vmatprep.mubr.bf16.mxu0 0
  %212 = vmatmul.mubr.bf16.gmra.mrb[0].mxu0 %v85
  %v213 = vpop.f32.mrb[0].mxu0
  %v214 = vadd.f32 %v121, %v213
  %v215 = vpop.f32.mrb[0].mxu0
  %v216 = vpop.f32.mrb[0].mxu0
  %v217 = vadd.f32 %v121, %v216
  %v218 = vpop.f32.mrb[0].mxu0
  %219 = vmatprep.mubr.bf16.mxu0 0
  %220 = vmatmul.mubr.bf16.gmra.mrb[0].mxu0 %v86
  %v221 = vpop.f32.mrb[0].mxu0
  %v222 = vadd.f32 %v121, %v221
  %v223 = vpop.f32.mrb[0].mxu0
  %v224 = vpop.f32.mrb[0].mxu0
  %v225 = vadd.f32 %v121, %v224
  %v226 = vpop.f32.mrb[0].mxu0
  %227 = vmatprep.mubr.bf16.mxu0 0
  %228 = vmatmul.mubr.bf16.gmra.mrb[0].mxu0 %v87
  %v229 = vpop.f32.mrb[0].mxu0
  %v230 = vadd.f32 %v121, %v229
  %v231 = vpop.f32.mrb[0].mxu0
  %v232 = vpop.f32.mrb[0].mxu0
  %v233 = vadd.f32 %v121, %v232
  %v234 = vpop.f32.mrb[0].mxu0
  %235 = vmatprep.mubr.bf16.mxu0 0
  %236 = vmatmul.mubr.bf16.gmra.mrb[0].mxu0 %v88
  %v237 = vpop.f32.mrb[0].mxu0
  %v238 = vadd.f32 %v121, %v237
  %v239 = vpop.f32.mrb[0].mxu0
  %v240 = vpop.f32.mrb[0].mxu0
  %v241 = vadd.f32 %v121, %v240
  %v242 = vpop.f32.mrb[0].mxu0
  %243 = vmatprep.mubr.bf16.mxu0 0
  %244 = vmatmul.mubr.bf16.gmra.mrb[0].mxu0 %v89
  %v245 = vpop.f32.mrb[0].mxu0
  %v246 = vadd.f32 %v121, %v245
  %v247 = vpop.f32.mrb[0].mxu0
  %v248 = vpop.f32.mrb[0].mxu0
  %v249 = vadd.f32 %v121, %v248
  %v250 = vpop.f32.mrb[0].mxu0
  %251 = vmatprep.mubr.bf16.mxu0 0
  %252 = vmatmul.mubr.bf16.gmra.mrb[0].mxu0 %v90
  %v253 = vpop.f32.mrb[0].mxu0
  %v254 = vadd.f32 %v121, %v253
  %v255 = vpop.f32.mrb[0].mxu0
  %v256 = vpop.f32.mrb[0].mxu0
  %v257 = vadd.f32 %v121, %v256
  %v258 = vpop.f32.mrb[0].mxu0
  %259 = vmatprep.mubr.bf16.mxu0 0
  %260 = vmatmul.mubr.bf16.gmra.mrb[0].mxu0 %v91
  %v261 = vpop.f32.mrb[0].mxu0
  %v262 = vadd.f32 %v121, %v261
  %v263 = vpop.f32.mrb[0].mxu0
  %v264 = vpop.f32.mrb[0].mxu0
  %v265 = vadd.f32 %v121, %v264
  %v266 = vpop.f32.mrb[0].mxu0
  %267 = vmatprep.mubr.bf16.mxu0 0
  %268 = vmatmul.mubr.bf16.gmra.mrb[0].mxu0 %v92
  %v269 = vpop.f32.mrb[0].mxu0
  %v270 = vadd.f32 %v121, %v269
  %v271 = vpop.f32.mrb[0].mxu0
  %v272 = vpop.f32.mrb[0].mxu0
  %v273 = vadd.f32 %v121, %v272
  %v274 = vpop.f32.mrb[0].mxu0
  %275 = vmatprep.mubr.bf16.mxu0 0
  %276 = vmatmul.mubr.bf16.gmra.mrb[0].mxu0 %v93
  %v277 = vpop.f32.mrb[0].mxu0
  %v278 = vadd.f32 %v121, %v277
  %v279 = vpop.f32.mrb[0].mxu0
  %v280 = vpop.f32.mrb[0].mxu0
  %v281 = vadd.f32 %v121, %v280
  %v282 = vpop.f32.mrb[0].mxu0
  %283 = vmatprep.mubr.bf16.mxu0 0
  %284 = vmatmul.mubr.bf16.gmra.mrb[0].mxu0 %v94
  %v285 = vpop.f32.mrb[0].mxu0
  %v286 = vadd.f32 %v121, %v285
  %v287 = vpop.f32.mrb[0].mxu0
  %v288 = vpop.f32.mrb[0].mxu0
  %v289 = vadd.f32 %v121, %v288
  %v290 = vpop.f32.mrb[0].mxu0
  %291 = vmatprep.mubr.bf16.mxu0 0
  %292 = vmatmul.mubr.bf16.gmra.mrb[0].mxu0 %v95
  %v293 = vpop.f32.mrb[0].mxu0
  %v294 = vadd.f32 %v121, %v293
  %v295 = vpop.f32.mrb[0].mxu0
  %v296 = vpop.f32.mrb[0].mxu0
  %v297 = vadd.f32 %v121, %v296
  %v298 = vpop.f32.mrb[0].mxu0
  %299 = vmatprep.mubr.bf16.mxu0 0
  %300 = vmatmul.mubr.bf16.gmra.mrb[0].mxu0 %v96
  %v301 = vpop.f32.mrb[0].mxu0
  %v302 = vadd.f32 %v121, %v301
  %v303 = vpop.f32.mrb[0].mxu0
  %v304 = vpop.f32.mrb[0].mxu0
  %v305 = vadd.f32 %v121, %v304
  %v306 = vpop.f32.mrb[0].mxu0
  %307 = vmatprep.mubr.bf16.mxu0 0
  %308 = vmatmul.mubr.bf16.gmra.mrb[0].mxu0 %v97
  %v309 = vpop.f32.mrb[0].mxu0
  %v310 = vadd.f32 %v121, %v309
  %v311 = vpop.f32.mrb[0].mxu0
  %v312 = vpop.f32.mrb[0].mxu0
  %v313 = vadd.f32 %v121, %v312
  %v314 = vpop.f32.mrb[0].mxu0
  %315 = vmatprep.mubr.bf16.mxu0 0
  %316 = vmatmul.mubr.bf16.gmra.mrb[0].mxu0 %v98
  %v317 = vpop.f32.mrb[0].mxu0
  %v318 = vadd.f32 %v121, %v317
  %v319 = vpop.f32.mrb[0].mxu0
  %v320 = vpop.f32.mrb[0].mxu0
  %v321 = vadd.f32 %v121, %v320
  %v322 = vpop.f32.mrb[0].mxu0
  %323 = vmatprep.mubr.bf16.mxu0 0
  %324 = vmatmul.mubr.bf16.gmra.mrb[0].mxu0 %v99
  %v325 = vpop.f32.mrb[0].mxu0
  %v326 = vadd.f32 %v121, %v325
  %v327 = vpop.f32.mrb[0].mxu0
  %v328 = vpop.f32.mrb[0].mxu0
  %v329 = vadd.f32 %v121, %v328
  %v330 = vpop.f32.mrb[0].mxu0
  %331 = vdwg.mxu0
  %v332 = vtanh.pop %v206
  %v333 = vtanh.pop %v209
  %v334 = vtanh.pop %v214
  %v335 = vtanh.pop %v217
  %v336 = vtanh.pop %v222
  %v337 = vtanh.pop %v225
  %v338 = vtanh.pop %v230
  %v339 = vtanh.pop %v233
  %v340 = vtanh.pop %v238
  %v341 = vtanh.pop %v241
  %v342 = vtanh.pop %v246
  %v343 = vtanh.pop %v249
  %v344 = vtanh.pop %v254
  %v345 = vtanh.pop %v257
  %v346 = vtanh.pop %v262
  %v347 = vtanh.pop %v265
  %v348 = vtanh.pop %v270
  %v349 = vtanh.pop %v273
  %v350 = vtanh.pop %v278
  %v351 = vtanh.pop %v281
  %v352 = vtanh.pop %v286
  %v353 = vtanh.pop %v289
  %v354 = vtanh.pop %v294
  %v355 = vtanh.pop %v297
  %v356 = vtanh.pop %v302
  %v357 = vtanh.pop %v305
  %v358 = vtanh.pop %v310
  %v359 = vtanh.pop %v313
  %v360 = vtanh.pop %v318
  %v361 = vtanh.pop %v321
  %v362 = vtanh.pop %v326
  %v363 = vtanh.pop %v329
  %v364 = vld [vmem:[%s3] sm:$0x1]
  %v365 = vadd.f32 %v332, %v333
  %v366 = vadd.f32 %v365, %v334
  %v367 = vadd.f32 %v366, %v335
  %v368 = vadd.f32 %v367, %v336
  %v369 = vadd.f32 %v368, %v337
  %v370 = vadd.f32 %v369, %v338
  %v371 = vadd.f32 %v370, %v339
  %v372 = vadd.f32 %v371, %v340
  %v373 = vadd.f32 %v372, %v341
  %v374 = vadd.f32 %v373, %v342
  %v375 = vadd.f32 %v374, %v343
  %v376 = vadd.f32 %v375, %v344
  %v377 = vadd.f32 %v376, %v345
  %v378 = vadd.f32 %v377, %v346
  %v379 = vadd.f32 %v378, %v347
  %v380 = vadd.f32 %v379, %v348
  %v381 = vadd.f32 %v380, %v349
  %v382 = vadd.f32 %v381, %v350
  %v383 = vadd.f32 %v382, %v351
  %v384 = vadd.f32 %v383, %v352
  %v385 = vadd.f32 %v384, %v353
  %v386 = vadd.f32 %v385, %v354
  %v387 = vadd.f32 %v386, %v355
  %v388 = vadd.f32 %v387, %v356
  %v389 = vadd.f32 %v388, %v357
  %v390 = vadd.f32 %v389, %v358
  %v391 = vadd.f32 %v390, %v359
  %v392 = vadd.f32 %v391, %v360
  %v393 = vadd.f32 %v392, %v361
  %v394 = vadd.f32 %v393, %v362
  %v395 = vadd.f32 %v394, %v363
  %v396 = vrot.slane %v395, 4
  %v397 = vadd.f32 %v395, %v396
  %v398 = vrot.slane %v397, 2
  %v399 = vadd.f32 %v397, %v398
  %v400 = vrot.slane %v399, 1
  %v401 = vadd.f32 %v399, %v400
  %v402 = vadd.f32 %v364, %v401
  %403 = vst [vmem:[%s3] sm:$0x1] %v402
  // Predicated region
  $region18: #{attention_forward.2} parent=0 // pred_check
    _
  $region19: #{attention_forward.2} parent=0 // pred_check_branch
    %405 = sbr.rel (0) target = $region21
  $region20: #{attention_forward.2} parent=0 // pred_region
    _
  $region21: #{attention_forward.2} parent=0 // pred_fallthru
    _
  // Predicated region
  $region22: #{attention_forward.2} parent=0 // pred_check
    _
  $region23: #{attention_forward.2} parent=0 // pred_check_branch
    %407 = sbr.rel (0) target = $region25
  $region24: #{attention_forward.2} parent=0 // pred_region
    _
  $region25: #{attention_forward.2} parent=0 // pred_fallthru
    _

// kernel: attention_forward.3
$region0: #{attention_forward.3}
  #allocation0 [shape = 'u32[]', space=smem, size = 0x4, offset = 0x4, fixed_abs, tag = 'smem constant byte address 0x4 - core index']
  #allocation1 [shape = 'u32[144,128]{1,0:T(1,128)}', space=vmem, size = 0x12000, scoped, tag = 'internal scratch']
  %s0 = inlined_call_operand.vmem [shape: f32[64,512], index: 0, kind: input, shape index: {}]
  %s1 = inlined_call_operand.vmem [shape: bf16[512,128], index: 1, kind: input, shape index: {}]
  %s2 = inlined_call_operand.vmem [shape: f32[64,128], index: 2, kind: output, shape index: {}]
  %s3 = sld [smem:[#allocation0]]
  $region18: #{attention_forward.3} parent=0
    _
  %s5 = ssub.s32 1, %s3
  %s6 = scalar_select 0, %s5, %s3
  // Predicated region
  $region2: #{attention_forward.3} parent=0 // pred_check
    _
  $region3: #{attention_forward.3} parent=0 // pred_check_branch
    %8 = sbr.rel (0) target = $region5
  $region4: #{attention_forward.3} parent=0 // pred_region
    _
  $region5: #{attention_forward.3} parent=0 // pred_fallthru
    _
  // Predicated region
  $region6: #{attention_forward.3} parent=0 // pred_check
    _
  $region7: #{attention_forward.3} parent=0 // pred_check_branch
    %10 = sbr.rel (0) target = $region9
  $region8: #{attention_forward.3} parent=0 // pred_region
    _
  $region9: #{attention_forward.3} parent=0 // pred_fallthru
    _
  %v12 = vld [vmem:[%s0] sm:$0xff]
  %v13 = vld [vmem:[%s0 + $0x8] sm:$0xff]
  %v14 = vld [vmem:[%s0 + $0x10] sm:$0xff]
  %v15 = vld [vmem:[%s0 + $0x18] sm:$0xff]
  %v16 = vld [vmem:[%s0 + $0x20] sm:$0xff]
  %v17 = vld [vmem:[%s0 + $0x28] sm:$0xff]
  %v18 = vld [vmem:[%s0 + $0x30] sm:$0xff]
  %v19 = vld [vmem:[%s0 + $0x38] sm:$0xff]
  %v20 = vld [vmem:[%s0 + $0x40] sm:$0xff]
  %v21 = vld [vmem:[%s0 + $0x48] sm:$0xff]
  %v22 = vld [vmem:[%s0 + $0x50] sm:$0xff]
  %v23 = vld [vmem:[%s0 + $0x58] sm:$0xff]
  %v24 = vld [vmem:[%s0 + $0x60] sm:$0xff]
  %v25 = vld [vmem:[%s0 + $0x68] sm:$0xff]
  %v26 = vld [vmem:[%s0 + $0x70] sm:$0xff]
  %v27 = vld [vmem:[%s0 + $0x78] sm:$0xff]
  %v28 = vld [vmem:[%s0 + $0x80] sm:$0xff]
  %v29 = vld [vmem:[%s0 + $0x88] sm:$0xff]
  %v30 = vld [vmem:[%s0 + $0x90] sm:$0xff]
  %v31 = vld [vmem:[%s0 + $0x98] sm:$0xff]
  %v32 = vld [vmem:[%s0 + $0xa0] sm:$0xff]
  %v33 = vld [vmem:[%s0 + $0xa8] sm:$0xff]
  %v34 = vld [vmem:[%s0 + $0xb0] sm:$0xff]
  %v35 = vld [vmem:[%s0 + $0xb8] sm:$0xff]
  %v36 = vld [vmem:[%s0 + $0xc0] sm:$0xff]
  %v37 = vld [vmem:[%s0 + $0xc8] sm:$0xff]
  %v38 = vld [vmem:[%s0 + $0xd0] sm:$0xff]
  %v39 = vld [vmem:[%s0 + $0xd8] sm:$0xff]
  %v40 = vld [vmem:[%s0 + $0xe0] sm:$0xff]
  %v41 = vld [vmem:[%s0 + $0xe8] sm:$0xff]
  %v42 = vld [vmem:[%s0 + $0xf0] sm:$0xff]
  %v43 = vld [vmem:[%s0 + $0xf8] sm:$0xff]
  %v44 = vpack.c.bf16 %v16, %v12
  %v45 = vpack.c.bf16 %v17, %v13
  %v46 = vpack.c.bf16 %v18, %v14
  %v47 = vpack.c.bf16 %v19, %v15
  %v48 = vpack.c.bf16 %v24, %v20
  %v49 = vpack.c.bf16 %v25, %v21
  %v50 = vpack.c.bf16 %v26, %v22
  %v51 = vpack.c.bf16 %v27, %v23
  %v52 = vpack.c.bf16 %v32, %v28
  %v53 = vpack.c.bf16 %v33, %v29
  %v54 = vpack.c.bf16 %v34, %v30
  %v55 = vpack.c.bf16 %v35, %v31
  %v56 = vpack.c.bf16 %v40, %v36
  %v57 = vpack.c.bf16 %v41, %v37
  %v58 = vpack.c.bf16 %v42, %v38
  %v59 = vpack.c.bf16 %v43, %v39
  %v60 = vld [vmem:[%s1] sm:$0xf]
  %v61 = vld [vmem:[%s1 + $0x4] sm:$0xf]
  %v62 = vld [vmem:[%s1 + $0x8] sm:$0xf]
  %v63 = vld [vmem:[%s1 + $0xc] sm:$0xf]
  %v64 = vld [vmem:[%s1 + $0x10] sm:$0xf]
  %v65 = vld [vmem:[%s1 + $0x14] sm:$0xf]
  %v66 = vld [vmem:[%s1 + $0x18] sm:$0xf]
  %v67 = vld [vmem:[%s1 + $0x1c] sm:$0xf]
  %v68 = vld [vmem:[%s1 + $0x20] sm:$0xf]
  %v69 = vld [vmem:[%s1 + $0x24] sm:$0xf]
  %v70 = vld [vmem:[%s1 + $0x28] sm:$0xf]
  %v71 = vld [vmem:[%s1 + $0x2c] sm:$0xf]
  %v72 = vld [vmem:[%s1 + $0x30] sm:$0xf]
  %v73 = vld [vmem:[%s1 + $0x34] sm:$0xf]
  %v74 = vld [vmem:[%s1 + $0x38] sm:$0xf]
  %v75 = vld [vmem:[%s1 + $0x3c] sm:$0xf]
  %v76 = vld [vmem:[%s1 + $0x40] sm:$0xf]
  %v77 = vld [vmem:[%s1 + $0x44] sm:$0xf]
  %v78 = vld [vmem:[%s1 + $0x48] sm:$0xf]
  %v79 = vld [vmem:[%s1 + $0x4c] sm:$0xf]
  %v80 = vld [vmem:[%s1 + $0x50] sm:$0xf]
  %v81 = vld [vmem:[%s1 + $0x54] sm:$0xf]
  %v82 = vld [vmem:[%s1 + $0x58] sm:$0xf]
  %v83 = vld [vmem:[%s1 + $0x5c] sm:$0xf]
  %v84 = vld [vmem:[%s1 + $0x60] sm:$0xf]
  %v85 = vld [vmem:[%s1 + $0x64] sm:$0xf]
  %v86 = vld [vmem:[%s1 + $0x68] sm:$0xf]
  %v87 = vld [vmem:[%s1 + $0x6c] sm:$0xf]
  %v88 = vld [vmem:[%s1 + $0x70] sm:$0xf]
  %v89 = vld [vmem:[%s1 + $0x74] sm:$0xf]
  %v90 = vld [vmem:[%s1 + $0x78] sm:$0xf]
  %v91 = vld [vmem:[%s1 + $0x7c] sm:$0xf]
  %v92 = vld [vmem:[%s1 + $0x80] sm:$0xf]
  %v93 = vld [vmem:[%s1 + $0x84] sm:$0xf]
  %v94 = vld [vmem:[%s1 + $0x88] sm:$0xf]
  %v95 = vld [vmem:[%s1 + $0x8c] sm:$0xf]
  %v96 = vld [vmem:[%s1 + $0x90] sm:$0xf]
  %v97 = vld [vmem:[%s1 + $0x94] sm:$0xf]
  %v98 = vld [vmem:[%s1 + $0x98] sm:$0xf]
  %v99 = vld [vmem:[%s1 + $0x9c] sm:$0xf]
  %v100 = vld [vmem:[%s1 + $0xa0] sm:$0xf]
  %v101 = vld [vmem:[%s1 + $0xa4] sm:$0xf]
  %v102 = vld [vmem:[%s1 + $0xa8] sm:$0xf]
  %v103 = vld [vmem:[%s1 + $0xac] sm:$0xf]
  %v104 = vld [vmem:[%s1 + $0xb0] sm:$0xf]
  %v105 = vld [vmem:[%s1 + $0xb4] sm:$0xf]
  %v106 = vld [vmem:[%s1 + $0xb8] sm:$0xf]
  %v107 = vld [vmem:[%s1 + $0xbc] sm:$0xf]
  %v108 = vld [vmem:[%s1 + $0xc0] sm:$0xf]
  %v109 = vld [vmem:[%s1 + $0xc4] sm:$0xf]
  %v110 = vld [vmem:[%s1 + $0xc8] sm:$0xf]
  %v111 = vld [vmem:[%s1 + $0xcc] sm:$0xf]
  %v112 = vld [vmem:[%s1 + $0xd0] sm:$0xf]
  %v113 = vld [vmem:[%s1 + $0xd4] sm:$0xf]
  %v114 = vld [vmem:[%s1 + $0xd8] sm:$0xf]
  %v115 = vld [vmem:[%s1 + $0xdc] sm:$0xf]
  %v116 = vld [vmem:[%s1 + $0xe0] sm:$0xf]
  %v117 = vld [vmem:[%s1 + $0xe4] sm:$0xf]
  %v118 = vld [vmem:[%s1 + $0xe8] sm:$0xf]
  %v119 = vld [vmem:[%s1 + $0xec] sm:$0xf]
  %v120 = vld [vmem:[%s1 + $0xf0] sm:$0xf]
  %v121 = vld [vmem:[%s1 + $0xf4] sm:$0xf]
  %v122 = vld [vmem:[%s1 + $0xf8] sm:$0xf]
  %v123 = vld [vmem:[%s1 + $0xfc] sm:$0xf]
  %v188 = vunpack.c.l.b16 %v60
  %v189 = vunpack.c.l.b16 %v61
  %v190 = vunpack.c.l.b16 %v62
  %v191 = vunpack.c.l.b16 %v63
  %v192 = vunpack.c.l.b16 %v64
  %v193 = vunpack.c.l.b16 %v65
  %v194 = vunpack.c.l.b16 %v66
  %v195 = vunpack.c.l.b16 %v67
  %v196 = vunpack.c.l.b16 %v68
  %v197 = vunpack.c.l.b16 %v69
  %v198 = vunpack.c.l.b16 %v70
  %v199 = vunpack.c.l.b16 %v71
  %v200 = vunpack.c.l.b16 %v72
  %v201 = vunpack.c.l.b16 %v73
  %v202 = vunpack.c.l.b16 %v74
  %v203 = vunpack.c.l.b16 %v75
  %v204 = vunpack.c.l.b16 %v76
  %v205 = vunpack.c.l.b16 %v77
  %v206 = vunpack.c.l.b16 %v78
  %v207 = vunpack.c.l.b16 %v79
  %v208 = vunpack.c.l.b16 %v80
  %v209 = vunpack.c.l.b16 %v81
  %v210 = vunpack.c.l.b16 %v82
  %v211 = vunpack.c.l.b16 %v83
  %v212 = vunpack.c.l.b16 %v84
  %v213 = vunpack.c.l.b16 %v85
  %v214 = vunpack.c.l.b16 %v86
  %v215 = vunpack.c.l.b16 %v87
  %v216 = vunpack.c.l.b16 %v88
  %v217 = vunpack.c.l.b16 %v89
  %v218 = vunpack.c.l.b16 %v90
  %v219 = vunpack.c.l.b16 %v91
  %v220 = vunpack.c.l.b16 %v92
  %v221 = vunpack.c.l.b16 %v93
  %v222 = vunpack.c.l.b16 %v94
  %v223 = vunpack.c.l.b16 %v95
  %v224 = vunpack.c.l.b16 %v96
  %v225 = vunpack.c.l.b16 %v97
  %v226 = vunpack.c.l.b16 %v98
  %v227 = vunpack.c.l.b16 %v99
  %v228 = vunpack.c.l.b16 %v100
  %v229 = vunpack.c.l.b16 %v101
  %v230 = vunpack.c.l.b16 %v102
  %v231 = vunpack.c.l.b16 %v103
  %v232 = vunpack.c.l.b16 %v104
  %v233 = vunpack.c.l.b16 %v105
  %v234 = vunpack.c.l.b16 %v106
  %v235 = vunpack.c.l.b16 %v107
  %v236 = vunpack.c.l.b16 %v108
  %v237 = vunpack.c.l.b16 %v109
  %v238 = vunpack.c.l.b16 %v110
  %v239 = vunpack.c.l.b16 %v111
  %v240 = vunpack.c.l.b16 %v112
  %v241 = vunpack.c.l.b16 %v113
  %v242 = vunpack.c.l.b16 %v114
  %v243 = vunpack.c.l.b16 %v115
  %v244 = vunpack.c.l.b16 %v116
  %v245 = vunpack.c.l.b16 %v117
  %v246 = vunpack.c.l.b16 %v118
  %v247 = vunpack.c.l.b16 %v119
  %v248 = vunpack.c.l.b16 %v120
  %v249 = vunpack.c.l.b16 %v121
  %v250 = vunpack.c.l.b16 %v122
  %v251 = vunpack.c.l.b16 %v123
  %v252 = vpack.c.b16 %v189, %v188
  %v253 = vpack.c.b16 %v191, %v190
  %v254 = vpack.c.b16 %v193, %v192
  %v255 = vpack.c.b16 %v195, %v194
  %v256 = vpack.c.b16 %v197, %v196
  %v257 = vpack.c.b16 %v199, %v198
  %v258 = vpack.c.b16 %v201, %v200
  %v259 = vpack.c.b16 %v203, %v202
  %v260 = vpack.c.b16 %v205, %v204
  %v261 = vpack.c.b16 %v207, %v206
  %v262 = vpack.c.b16 %v209, %v208
  %v263 = vpack.c.b16 %v211, %v210
  %v264 = vpack.c.b16 %v213, %v212
  %v265 = vpack.c.b16 %v215, %v214
  %v266 = vpack.c.b16 %v217, %v216
  %v267 = vpack.c.b16 %v219, %v218
  %v268 = vpack.c.b16 %v221, %v220
  %v269 = vpack.c.b16 %v223, %v222
  %v270 = vpack.c.b16 %v225, %v224
  %v271 = vpack.c.b16 %v227, %v226
  %v272 = vpack.c.b16 %v229, %v228
  %v273 = vpack.c.b16 %v231, %v230
  %v274 = vpack.c.b16 %v233, %v232
  %v275 = vpack.c.b16 %v235, %v234
  %v276 = vpack.c.b16 %v237, %v236
  %v277 = vpack.c.b16 %v239, %v238
  %v278 = vpack.c.b16 %v241, %v240
  %v279 = vpack.c.b16 %v243, %v242
  %v280 = vpack.c.b16 %v245, %v244
  %v281 = vpack.c.b16 %v247, %v246
  %v282 = vpack.c.b16 %v249, %v248
  %v283 = vpack.c.b16 %v251, %v250
  %316 = vmatprep.subr.bf16.mxu0 0
  %317 = vmatpush1.bf16.msra.mxu0 %v252
  %318 = vmatprep.subr.bf16.mxu0 0
  %319 = vmatpush1.bf16.msra.mxu0 %v253
  %320 = vmatprep.subr.bf16.mxu0 0
  %321 = vmatpush1.bf16.msra.mxu0 %v254
  %322 = vmatprep.subr.bf16.mxu0 0
  %323 = vmatpush1.bf16.msra.mxu0 %v255
  %324 = vmatprep.subr.bf16.mxu0 0
  %325 = vmatpush1.bf16.msra.mxu0 %v256
  %326 = vmatprep.subr.bf16.mxu0 0
  %327 = vmatpush1.bf16.msra.mxu0 %v257
  %328 = vmatprep.subr.bf16.mxu0 0
  %329 = vmatpush1.bf16.msra.mxu0 %v258
  %330 = vmatprep.subr.bf16.mxu0 0
  %331 = vmatpush1.bf16.msra.mxu0 %v259
  %332 = vmatprep.subr.bf16.mxu0 0
  %333 = vmatpush1.bf16.msra.mxu0 %v260
  %334 = vmatprep.subr.bf16.mxu0 0
  %335 = vmatpush1.bf16.msra.mxu0 %v261
  %336 = vmatprep.subr.bf16.mxu0 0
  %337 = vmatpush1.bf16.msra.mxu0 %v262
  %338 = vmatprep.subr.bf16.mxu0 0
  %339 = vmatpush1.bf16.msra.mxu0 %v263
  %340 = vmatprep.subr.bf16.mxu0 0
  %341 = vmatpush1.bf16.msra.mxu0 %v264
  %342 = vmatprep.subr.bf16.mxu0 0
  %343 = vmatpush1.bf16.msra.mxu0 %v265
  %344 = vmatprep.subr.bf16.mxu0 0
  %345 = vmatpush1.bf16.msra.mxu0 %v266
  %346 = vmatprep.subr.bf16.mxu0 0
  %347 = vmatpush1.bf16.msra.mxu0 %v267
  %348 = vmatprep.mubr.bf16.mxu0 %v45
  %349 = vmatmul.mubr.bf16.gmra.mrb[0].mxu0 %v44
  %v350 = vpop.f32.mrb[0].mxu0
  %v351 = vadd.f32 0.0, %v350
  %v352 = vpop.f32.mrb[0].mxu0
  %v353 = vpop.f32.mrb[0].mxu0
  %v354 = vadd.f32 0.0, %v353
  %v355 = vpop.f32.mrb[0].mxu0
  %356 = vmatprep.mubr.bf16.mxu0 %v49
  %357 = vmatmul.mubr.bf16.gmra.mrb[0].mxu0 %v48
  %v358 = vpop.f32.mrb[0].mxu0
  %v359 = vadd.f32 0.0, %v358
  %v360 = vpop.f32.mrb[0].mxu0
  %v361 = vpop.f32.mrb[0].mxu0
  %v362 = vadd.f32 0.0, %v361
  %v363 = vpop.f32.mrb[0].mxu0
  %364 = vmatprep.mubr.bf16.mxu0 %v53
  %365 = vmatmul.mubr.bf16.gmra.mrb[0].mxu0 %v52
  %v366 = vpop.f32.mrb[0].mxu0
  %v367 = vadd.f32 0.0, %v366
  %v368 = vpop.f32.mrb[0].mxu0
  %v369 = vpop.f32.mrb[0].mxu0
  %v370 = vadd.f32 0.0, %v369
  %v371 = vpop.f32.mrb[0].mxu0
  %372 = vmatprep.mubr.bf16.mxu0 %v57
  %373 = vmatmul.mubr.bf16.gmra.mrb[0].mxu0 %v56
  %v374 = vpop.f32.mrb[0].mxu0
  %v375 = vadd.f32 0.0, %v374
  %v376 = vpop.f32.mrb[0].mxu0
  %v377 = vpop.f32.mrb[0].mxu0
  %v378 = vadd.f32 0.0, %v377
  %v379 = vpop.f32.mrb[0].mxu0
  %380 = vdwg.mxu0
  %381 = vmatprep.subr.bf16.mxu0 0
  %382 = vmatpush1.bf16.msra.mxu0 %v268
  %383 = vmatprep.subr.bf16.mxu0 0
  %384 = vmatpush1.bf16.msra.mxu0 %v269
  %385 = vmatprep.subr.bf16.mxu0 0
  %386 = vmatpush1.bf16.msra.mxu0 %v270
  %387 = vmatprep.subr.bf16.mxu0 0
  %388 = vmatpush1.bf16.msra.mxu0 %v271
  %389 = vmatprep.subr.bf16.mxu0 0
  %390 = vmatpush1.bf16.msra.mxu0 %v272
  %391 = vmatprep.subr.bf16.mxu0 0
  %392 = vmatpush1.bf16.msra.mxu0 %v273
  %393 = vmatprep.subr.bf16.mxu0 0
  %394 = vmatpush1.bf16.msra.mxu0 %v274
  %395 = vmatprep.subr.bf16.mxu0 0
  %396 = vmatpush1.bf16.msra.mxu0 %v275
  %397 = vmatprep.subr.bf16.mxu0 0
  %398 = vmatpush1.bf16.msra.mxu0 %v276
  %399 = vmatprep.subr.bf16.mxu0 0
  %400 = vmatpush1.bf16.msra.mxu0 %v277
  %401 = vmatprep.subr.bf16.mxu0 0
  %402 = vmatpush1.bf16.msra.mxu0 %v278
  %403 = vmatprep.subr.bf16.mxu0 0
  %404 = vmatpush1.bf16.msra.mxu0 %v279
  %405 = vmatprep.subr.bf16.mxu0 0
  %406 = vmatpush1.bf16.msra.mxu0 %v280
  %407 = vmatprep.subr.bf16.mxu0 0
  %408 = vmatpush1.bf16.msra.mxu0 %v281
  %409 = vmatprep.subr.bf16.mxu0 0
  %410 = vmatpush1.bf16.msra.mxu0 %v282
  %411 = vmatprep.subr.bf16.mxu0 0
  %412 = vmatpush1.bf16.msra.mxu0 %v283
  %413 = vmatprep.mubr.bf16.mxu0 %v47
  %414 = vmatmul.mubr.bf16.gmra.mrb[0].mxu0 %v46
  %v415 = vpop.f32.mrb[0].mxu0
  %v416 = vadd.f32 %v351, %v415
  %v417 = vpop.f32.mrb[0].mxu0
  %v418 = vpop.f32.mrb[0].mxu0
  %v419 = vadd.f32 %v354, %v418
  %v420 = vpop.f32.mrb[0].mxu0
  %421 = vmatprep.mubr.bf16.mxu0 %v51
  %422 = vmatmul.mubr.bf16.gmra.mrb[0].mxu0 %v50
  %v423 = vpop.f32.mrb[0].mxu0
  %v424 = vadd.f32 %v359, %v423
  %v425 = vpop.f32.mrb[0].mxu0
  %v426 = vpop.f32.mrb[0].mxu0
  %v427 = vadd.f32 %v362, %v426
  %v428 = vpop.f32.mrb[0].mxu0
  %429 = vmatprep.mubr.bf16.mxu0 %v55
  %430 = vmatmul.mubr.bf16.gmra.mrb[0].mxu0 %v54
  %v431 = vpop.f32.mrb[0].mxu0
  %v432 = vadd.f32 %v367, %v431
  %v433 = vpop.f32.mrb[0].mxu0
  %v434 = vpop.f32.mrb[0].mxu0
  %v435 = vadd.f32 %v370, %v434
  %v436 = vpop.f32.mrb[0].mxu0
  %437 = vmatprep.mubr.bf16.mxu0 %v59
  %438 = vmatmul.mubr.bf16.gmra.mrb[0].mxu0 %v58
  %v439 = vpop.f32.mrb[0].mxu0
  %v440 = vadd.f32 %v375, %v439
  %v441 = vpop.f32.mrb[0].mxu0
  %v442 = vpop.f32.mrb[0].mxu0
  %v443 = vadd.f32 %v378, %v442
  %v444 = vpop.f32.mrb[0].mxu0
  %445 = vdwg.mxu0
  %446 = vst [vmem:[%s2] sm:$0xff] %v416
  %447 = vst [vmem:[%s2 + $0x8] sm:$0xff] %v419
  %448 = vst [vmem:[%s2 + $0x10] sm:$0xff] %v424
  %449 = vst [vmem:[%s2 + $0x18] sm:$0xff] %v427
  %450 = vst [vmem:[%s2 + $0x20] sm:$0xff] %v432
  %451 = vst [vmem:[%s2 + $0x28] sm:$0xff] %v435
  %452 = vst [vmem:[%s2 + $0x30] sm:$0xff] %v440
  %453 = vst [vmem:[%s2 + $0x38] sm:$0xff] %v443
  // Predicated region
  $region10: #{attention_forward.3} parent=0 // pred_check
    _
  $region11: #{attention_forward.3} parent=0 // pred_check_branch
    %455 = sbr.rel (0) target = $region13
  $region12: #{attention_forward.3} parent=0 // pred_region
    _
  $region13: #{attention_forward.3} parent=0 // pred_fallthru
    _
  // Predicated region
  $region14: #{attention_forward.3} parent=0 // pred_check
    _
  $region15: #{attention_forward.3} parent=0 // pred_check_branch
    %457 = sbr.rel (0) target = $region17
  $region16: #{attention_forward.3} parent=0 // pred_region
    _
  $region17: #{attention_forward.3} parent=0 // pred_fallthru
    _

</llo_original>
